<compile_context>
chip_gen: v7x
topology: tpu7x:2x2x1
jax: 0.10.0
libtpu: 0.0.40
codegen_flags: <defaults>
</compile_context>

<pallas_src>
import jax
import jax.numpy as jnp
from jax.experimental import pallas as pl
from jax.experimental.pallas import tpu as pltpu


# ----------------------------- configuration --------------------------------
B = 2            # batch
C = 4            # in_channels
EXPAND = 2
CO = C * EXPAND  # hidden channels of the first conv in conv_op
K = 3            # kernel size
PAD = 2          # ReplicationPad1d padding (pad = kernel - 1 keeps length)
SEQ = 16         # input sequence length
L = SEQ // 2     # length of each (even / odd) branch
LP = L + 2 * PAD           # padded length
L1 = LP - K + 1            # after first conv
L2 = L1 - K + 1            # after second conv (== L)
assert L2 == L, "conv_op must preserve branch length"

R = B * C        # rows per signal group once batch is folded onto sublanes
G = 2            # branch pairs fused per phase (psi|phi and nu|ro)


# ------------------------------- Pallas kernel -------------------------------
def sci_block_kernel(m1_ref, w1_ref, w2_ref, out_ref):
    """Fused SCI_Block.

    m1_ref : (K*G*R, L1)  pre-built im2col of [pad(F_odd); pad(F_even)]
    w1_ref : (2, G*B*CO, K*G*B*C)   stage-1 block-diag weights, [phase1, phase2]
    w2_ref : (2, G*B*C, K*G*B*CO)   stage-2 block-diag weights, [phase1, phase2]
    out_ref: (B*C, 2*L)   [F_even_final | F_odd_final] along lanes
    """
    m1 = m1_ref[...]                              # (48, 10)
    # raw (unpadded) signals recovered from the tap-0 rows of the im2col slab
    fo = m1[0:R, PAD:PAD + L]                     # (8, 8)  F_odd  = x[:, :, 0::2]
    fe = m1[R:2 * R, PAD:PAD + L]                 # (8, 8)  F_even = x[:, :, 1::2]

    def two_stage(m, w1, w2):
        # stage 1: one im2col matmul for both fused branches + all batch rows
        h = jnp.dot(w1, m, preferred_element_type=jnp.float32)    # (2*B*CO, L1)
        h = jnp.where(h > 0, h, 0.01 * h)                         # LeakyReLU(0.01)
        # Dropout(0.5): identity in eval mode
        m2 = jnp.concatenate([h[:, k:k + L2] for k in range(K)], axis=0)
        y = jnp.dot(w2, m2, preferred_element_type=jnp.float32)   # (2*B*C, L2)
        return jnp.tanh(y)

    # ---- phase 1: psi(F_odd) / phi(F_even) fused into one pair of matmuls ----
    y1 = two_stage(m1, w1_ref[0], w2_ref[0])      # rows 0..R-1 = psi, R..2R-1 = phi
    f_even_s = fe * jnp.exp(y1[0:R])              # F_even * exp(psi(F_odd))
    f_odd_s = fo * jnp.exp(y1[R:2 * R])           # F_odd  * exp(phi(F_even))

    # ---- phase 2: nu(F_odd_s) / ro(F_even_s) — in-kernel pad + im2col --------
    s2 = jnp.concatenate([f_odd_s, f_even_s], axis=0)             # (16, L)
    left = jnp.broadcast_to(s2[:, 0:1], (G * R, PAD))
    right = jnp.broadcast_to(s2[:, L - 1:L], (G * R, PAD))
    xp2 = jnp.concatenate([left, s2, right], axis=1)              # (16, LP)
    m1b = jnp.concatenate([xp2[:, k:k + L1] for k in range(K)], axis=0)  # (48, L1)

    y2 = two_stage(m1b, w1_ref[1], w2_ref[1])     # rows 0..R-1 = nu, R..2R-1 = ro
    f_even_final = f_odd_s - y2[0:R]              # F_odd_s - nu(F_odd_s)
    f_odd_final = f_even_s + y2[R:2 * R]          # F_even_s + ro(F_even_s)

    out_ref[...] = jnp.concatenate([f_even_final, f_odd_final], axis=1)  # (8, 16)


# --------------------------- host-side weight fusion --------------------------
def _fuse_stage1(w1_a, w1_b):
    """Two (CO, C, K) conv weights -> one (G*B*CO, K*G*B*C) block-diag slab."""
    stack = jnp.stack([w1_a, w1_b])                               # (G, CO, C, K)
    big = jnp.einsum("gock,gh,bd->gbokhdc", stack,
                     jnp.eye(G, dtype=stack.dtype), jnp.eye(B, dtype=stack.dtype))
    return big.reshape(G * B * CO, K * G * B * C)                 # (32, 48)


def _fuse_stage2(w2_a, w2_b):
    """Two (C, CO, K) conv weights -> one (G*B*C, K*G*B*CO) block-diag slab."""
    stack = jnp.stack([w2_a, w2_b])                               # (G, C, CO, K)
    big = jnp.einsum("gcok,gh,bd->gbckhdo", stack,
                     jnp.eye(G, dtype=stack.dtype), jnp.eye(B, dtype=stack.dtype))
    return big.reshape(G * B * C, K * G * B * CO)                 # (16, 96)


# ------------------------------- wrapper -------------------------------------
def sci_block(x, params):
    """x: (B, C, SEQ) float32. Returns (F_even_final, F_odd_final), (B, C, L)."""
    # split (glue): PyTorch code names arange(1,..,2) "idx_even"
    fe = x[:, :, 1::2].reshape(B * C, L)          # F_even
    fo = x[:, :, 0::2].reshape(B * C, L)          # F_odd

    # hoisted ReplicationPad1d + im2col for phase 1 (pure XLA, fuses with split)
    fo_pad = jnp.pad(fo, ((0, 0), (PAD, PAD)), mode="edge")
    fe_pad = jnp.pad(fe, ((0, 0), (PAD, PAD)), mode="edge")
    xin = jnp.concatenate([fo_pad, fe_pad], axis=0)               # (16, LP)
    m1 = jnp.concatenate([xin[:, k:k + L1] for k in range(K)], axis=0)   # (48, L1)

    # 2 weight inputs instead of 8: [phase1 (psi|phi), phase2 (nu|ro)]
    w1_all = jnp.stack([_fuse_stage1(params["psi_w1"], params["phi_w1"]),
                        _fuse_stage1(params["nu_w1"], params["ro_w1"])])
    w2_all = jnp.stack([_fuse_stage2(params["psi_w2"], params["phi_w2"]),
                        _fuse_stage2(params["nu_w2"], params["ro_w2"])])

    vmem = pl.BlockSpec(memory_space=pltpu.MemorySpace.VMEM)
    out = pl.pallas_call(
        sci_block_kernel,
        out_shape=jax.ShapeDtypeStruct((B * C, 2 * L), jnp.float32),
        in_specs=[vmem, vmem, vmem],
        out_specs=vmem,
    )(m1, w1_all, w2_all)

    f_even_final = out[:, :L].reshape(B, C, L)
    f_odd_final = out[:, L:].reshape(B, C, L)
    return f_even_final, f_odd_final


# --------------------------- pure-JAX reference -------------------------------
def _conv_op_ref(x, w1, w2):
    xp = jnp.pad(x, ((0, 0), (0, 0), (PAD, PAD)), mode="edge")
    h = jnp.zeros((x.shape[0], CO, L1), jnp.float32)
    for k in range(K):
        h = h + jnp.einsum("oc,bcl->bol", w1[:, :, k], xp[:, :, k:k + L1])
    h = jnp.where(h > 0, h, 0.01 * h)
    y = jnp.zeros((x.shape[0], C, L2), jnp.float32)
    for k in range(K):
        y = y + jnp.einsum("oc,bcl->bol", w2[:, :, k], h[:, :, k:k + L2])
    return jnp.tanh(y)


def sci_block_ref(x, p):
    fe = x[:, :, 1::2]
    fo = x[:, :, 0::2]
    fe_s = fe * jnp.exp(_conv_op_ref(fo, p["psi_w1"], p["psi_w2"]))
    fo_s = fo * jnp.exp(_conv_op_ref(fe, p["phi_w1"], p["phi_w2"]))
    fe_final = fo_s - _conv_op_ref(fo_s, p["nu_w1"], p["nu_w2"])
    fo_final = fe_s + _conv_op_ref(fe_s, p["ro_w1"], p["ro_w2"])
    return fe_final, fo_final


# ------------------------------ param init -----------------------------------
def init_params(key):
    params = {}
    names = ["psi", "phi", "nu", "ro"]
    keys = jax.random.split(key, 2 * len(names))
    bound1 = 1.0 / jnp.sqrt(C * K)    # PyTorch default kaiming-uniform bound
    bound2 = 1.0 / jnp.sqrt(CO * K)
    for i, name in enumerate(names):
        params[f"{name}_w1"] = jax.random.uniform(
            keys[2 * i], (CO, C, K), jnp.float32, -bound1, bound1)
        params[f"{name}_w2"] = jax.random.uniform(
            keys[2 * i + 1], (C, CO, K), jnp.float32, -bound2, bound2)
    return params


# --------------------------------- main ---------------------------------------
if __name__ == "__main__":
    key = jax.random.PRNGKey(0)
    k_x, k_p = jax.random.split(key)
    x = jax.random.normal(k_x, (B, C, SEQ), jnp.float32)
    params = init_params(k_p)

    even_out, odd_out = jax.jit(sci_block)(x, params)
    even_out = jax.block_until_ready(even_out)
    odd_out = jax.block_until_ready(odd_out)

    even_ref, odd_ref = sci_block_ref(x, params)
    assert even_out.shape == (B, C, L) and odd_out.shape == (B, C, L)
    assert jnp.allclose(even_out, even_ref, atol=1e-4, rtol=1e-4)
    assert jnp.allclose(odd_out, odd_ref, atol=1e-4, rtol=1e-4)

    print("KERNEL_OK")
</pallas_src>

<mosaic_0001>
module attributes {stable_mosaic.version = 11 : i64} {
  func.func @sci_block_kernel(%arg0: memref<48x10xf32, #tpu.memory_space<vmem>>, %arg1: memref<2x32x48xf32, #tpu.memory_space<vmem>>, %arg2: memref<2x16x96xf32, #tpu.memory_space<vmem>>, %arg3: memref<8x16xf32, #tpu.memory_space<vmem>>) attributes {dimension_semantics = [], scalar_prefetch = 0 : i64, scratch_operands = 0 : i64, tpu.core_type = #tpu.core_type<tc>} {
    %c0 = arith.constant 0 : index
    %c0_0 = arith.constant 0 : index
    %0 = vector.load %arg0[%c0, %c0_0] : memref<48x10xf32, #tpu.memory_space<vmem>>, vector<48x10xf32>
    %1 = vector.extract_strided_slice %0 {offsets = [0, 2], sizes = [8, 8], strides = [1, 1]} : vector<48x10xf32> to vector<8x8xf32>
    %2 = vector.extract_strided_slice %0 {offsets = [8, 2], sizes = [8, 8], strides = [1, 1]} : vector<48x10xf32> to vector<8x8xf32>
    %c0_1 = arith.constant 0 : index
    %c0_2 = arith.constant 0 : index
    %c0_3 = arith.constant 0 : index
    %3 = vector.load %arg1[%c0_1, %c0_2, %c0_3] : memref<2x32x48xf32, #tpu.memory_space<vmem>>, vector<1x32x48xf32>
    %4 = vector.shape_cast %3 : vector<1x32x48xf32> to vector<32x48xf32>
    %c0_4 = arith.constant 0 : index
    %c0_5 = arith.constant 0 : index
    %c0_6 = arith.constant 0 : index
    %5 = vector.load %arg2[%c0_4, %c0_5, %c0_6] : memref<2x16x96xf32, #tpu.memory_space<vmem>>, vector<1x16x96xf32>
    %6 = vector.shape_cast %5 : vector<1x16x96xf32> to vector<16x96xf32>
    %cst = arith.constant dense<0.000000e+00> : vector<32x10xf32>
    %7 = tpu.matmul %4, %0, %cst {dimension_numbers = #tpu.dot_dimension_numbers<[1], [0], [0], [1], [0, 0, 1, 1], [], []>} : vector<32x48xf32>, vector<48x10xf32>, vector<32x10xf32> -> vector<32x10xf32>
    %cst_7 = arith.constant 0.000000e+00 : f32
    %8 = vector.broadcast %cst_7 : f32 to vector<32x10xf32>
    %9 = arith.cmpf ogt, %7, %8 : vector<32x10xf32>
    %cst_8 = arith.constant 0.00999999977 : f32
    %10 = vector.broadcast %cst_8 : f32 to vector<32x10xf32>
    %11 = arith.mulf %10, %7 : vector<32x10xf32>
    %12 = arith.select %9, %7, %11 : vector<32x10xi1>, vector<32x10xf32>
    %13 = vector.extract_strided_slice %12 {offsets = [0, 0], sizes = [32, 8], strides = [1, 1]} : vector<32x10xf32> to vector<32x8xf32>
    %14 = vector.extract_strided_slice %12 {offsets = [0, 1], sizes = [32, 8], strides = [1, 1]} : vector<32x10xf32> to vector<32x8xf32>
    %15 = vector.extract_strided_slice %12 {offsets = [0, 2], sizes = [32, 8], strides = [1, 1]} : vector<32x10xf32> to vector<32x8xf32>
    %16 = tpu.concatenate %13, %14, %15 in 0 : vector<32x8xf32>, vector<32x8xf32>, vector<32x8xf32> -> vector<96x8xf32>
    %cst_9 = arith.constant dense<0.000000e+00> : vector<16x8xf32>
    %17 = tpu.matmul %6, %16, %cst_9 {dimension_numbers = #tpu.dot_dimension_numbers<[1], [0], [0], [1], [0, 0, 1, 1], [], []>} : vector<16x96xf32>, vector<96x8xf32>, vector<16x8xf32> -> vector<16x8xf32>
    %18 = math.tanh %17 : vector<16x8xf32>
    %19 = vector.extract_strided_slice %18 {offsets = [0, 0], sizes = [8, 8], strides = [1, 1]} : vector<16x8xf32> to vector<8x8xf32>
    %20 = math.exp %19 : vector<8x8xf32>
    %21 = arith.mulf %2, %20 : vector<8x8xf32>
    %22 = vector.extract_strided_slice %18 {offsets = [8, 0], sizes = [8, 8], strides = [1, 1]} : vector<16x8xf32> to vector<8x8xf32>
    %23 = math.exp %22 : vector<8x8xf32>
    %24 = arith.mulf %1, %23 : vector<8x8xf32>
    %25 = tpu.concatenate %24, %21 in 0 : vector<8x8xf32>, vector<8x8xf32> -> vector<16x8xf32>
    %26 = vector.extract_strided_slice %25 {offsets = [0, 0], sizes = [16, 1], strides = [1, 1]} : vector<16x8xf32> to vector<16x1xf32>
    %27 = vector.shape_cast %26 : vector<16x1xf32> to vector<16x1xf32>
    %28 = vector.broadcast %27 : vector<16x1xf32> to vector<16x2xf32>
    %29 = vector.extract_strided_slice %25 {offsets = [0, 7], sizes = [16, 1], strides = [1, 1]} : vector<16x8xf32> to vector<16x1xf32>
    %30 = vector.shape_cast %29 : vector<16x1xf32> to vector<16x1xf32>
    %31 = vector.broadcast %30 : vector<16x1xf32> to vector<16x2xf32>
    %32 = tpu.concatenate %28, %25, %31 in 1 : vector<16x2xf32>, vector<16x8xf32>, vector<16x2xf32> -> vector<16x12xf32>
    %33 = vector.extract_strided_slice %32 {offsets = [0, 0], sizes = [16, 10], strides = [1, 1]} : vector<16x12xf32> to vector<16x10xf32>
    %34 = vector.extract_strided_slice %32 {offsets = [0, 1], sizes = [16, 10], strides = [1, 1]} : vector<16x12xf32> to vector<16x10xf32>
    %35 = vector.extract_strided_slice %32 {offsets = [0, 2], sizes = [16, 10], strides = [1, 1]} : vector<16x12xf32> to vector<16x10xf32>
    %36 = tpu.concatenate %33, %34, %35 in 0 : vector<16x10xf32>, vector<16x10xf32>, vector<16x10xf32> -> vector<48x10xf32>
    %c1 = arith.constant 1 : index
    %c0_10 = arith.constant 0 : index
    %c0_11 = arith.constant 0 : index
    %37 = vector.load %arg1[%c1, %c0_10, %c0_11] : memref<2x32x48xf32, #tpu.memory_space<vmem>>, vector<1x32x48xf32>
    %38 = vector.shape_cast %37 : vector<1x32x48xf32> to vector<32x48xf32>
    %c1_12 = arith.constant 1 : index
    %c0_13 = arith.constant 0 : index
    %c0_14 = arith.constant 0 : index
    %39 = vector.load %arg2[%c1_12, %c0_13, %c0_14] : memref<2x16x96xf32, #tpu.memory_space<vmem>>, vector<1x16x96xf32>
    %40 = vector.shape_cast %39 : vector<1x16x96xf32> to vector<16x96xf32>
    %cst_15 = arith.constant dense<0.000000e+00> : vector<32x10xf32>
    %41 = tpu.matmul %38, %36, %cst_15 {dimension_numbers = #tpu.dot_dimension_numbers<[1], [0], [0], [1], [0, 0, 1, 1], [], []>} : vector<32x48xf32>, vector<48x10xf32>, vector<32x10xf32> -> vector<32x10xf32>
    %cst_16 = arith.constant 0.000000e+00 : f32
    %42 = vector.broadcast %cst_16 : f32 to vector<32x10xf32>
    %43 = arith.cmpf ogt, %41, %42 : vector<32x10xf32>
    %cst_17 = arith.constant 0.00999999977 : f32
    %44 = vector.broadcast %cst_17 : f32 to vector<32x10xf32>
    %45 = arith.mulf %44, %41 : vector<32x10xf32>
    %46 = arith.select %43, %41, %45 : vector<32x10xi1>, vector<32x10xf32>
    %47 = vector.extract_strided_slice %46 {offsets = [0, 0], sizes = [32, 8], strides = [1, 1]} : vector<32x10xf32> to vector<32x8xf32>
    %48 = vector.extract_strided_slice %46 {offsets = [0, 1], sizes = [32, 8], strides = [1, 1]} : vector<32x10xf32> to vector<32x8xf32>
    %49 = vector.extract_strided_slice %46 {offsets = [0, 2], sizes = [32, 8], strides = [1, 1]} : vector<32x10xf32> to vector<32x8xf32>
    %50 = tpu.concatenate %47, %48, %49 in 0 : vector<32x8xf32>, vector<32x8xf32>, vector<32x8xf32> -> vector<96x8xf32>
    %cst_18 = arith.constant dense<0.000000e+00> : vector<16x8xf32>
    %51 = tpu.matmul %40, %50, %cst_18 {dimension_numbers = #tpu.dot_dimension_numbers<[1], [0], [0], [1], [0, 0, 1, 1], [], []>} : vector<16x96xf32>, vector<96x8xf32>, vector<16x8xf32> -> vector<16x8xf32>
    %52 = math.tanh %51 : vector<16x8xf32>
    %53 = vector.extract_strided_slice %52 {offsets = [0, 0], sizes = [8, 8], strides = [1, 1]} : vector<16x8xf32> to vector<8x8xf32>
    %54 = arith.subf %24, %53 : vector<8x8xf32>
    %55 = vector.extract_strided_slice %52 {offsets = [8, 0], sizes = [8, 8], strides = [1, 1]} : vector<16x8xf32> to vector<8x8xf32>
    %56 = arith.addf %21, %55 : vector<8x8xf32>
    %57 = tpu.concatenate %54, %56 in 1 : vector<8x8xf32>, vector<8x8xf32> -> vector<8x16xf32>
    %c0_19 = arith.constant 0 : index
    %c0_20 = arith.constant 0 : index
    %58 = vector.load %arg3[%c0_19, %c0_20] : memref<8x16xf32, #tpu.memory_space<vmem>>, vector<8x16xf32>
    tpu.vector_store %arg3[%c0_19, %c0_20], %57 {strides = array<i32>} : memref<8x16xf32, #tpu.memory_space<vmem>>, vector<8x16xf32>,
    return
  }
}

</mosaic_0001>

<llo_original>
// kernel: sci_block.1
$region0: #{sci_block.1}
  #allocation0 [shape = 'u32[]', space=smem, size = 0x4, offset = 0x4, fixed_abs, tag = 'smem constant byte address 0x4 - core index']
  #allocation1 [shape = 'u32[144,128]{1,0:T(1,128)}', space=vmem, size = 0x12000, scoped, tag = 'internal scratch']
  %s0 = inlined_call_operand.vmem [shape: f32[48,10], index: 0, kind: input, shape index: {}]
  %s1 = inlined_call_operand.vmem [shape: f32[2,32,48], index: 1, kind: input, shape index: {}]
  %s2 = inlined_call_operand.vmem [shape: f32[2,16,96], index: 2, kind: input, shape index: {}]
  %s3 = inlined_call_operand.vmem [shape: f32[8,16], index: 3, kind: output, shape index: {}]
  %s4 = sld [smem:[#allocation0]]
  $region22: #{sci_block.1} parent=0
    _
  %s6 = ssub.s32 1, %s4
  %s7 = scalar_select 0, %s6, %s4
  // Predicated region
  $region2: #{sci_block.1} parent=0 // pred_check
    _
  $region3: #{sci_block.1} parent=0 // pred_check_branch
    %9 = sbr.rel (0) target = $region5
  $region4: #{sci_block.1} parent=0 // pred_region
    _
  $region5: #{sci_block.1} parent=0 // pred_fallthru
    _
  // Predicated region
  $region6: #{sci_block.1} parent=0 // pred_check
    _
  $region7: #{sci_block.1} parent=0 // pred_check_branch
    %11 = sbr.rel (0) target = $region9
  $region8: #{sci_block.1} parent=0 // pred_region
    _
  $region9: #{sci_block.1} parent=0 // pred_fallthru
    _
  // Predicated region
  $region10: #{sci_block.1} parent=0 // pred_check
    _
  $region11: #{sci_block.1} parent=0 // pred_check_branch
    %13 = sbr.rel (0) target = $region13
  $region12: #{sci_block.1} parent=0 // pred_region
    _
  $region13: #{sci_block.1} parent=0 // pred_fallthru
    _
  %v14 = vld [vmem:[%s0] sm:$0xff]
  %v15 = vld [vmem:[%s0 + $0x8] sm:$0xff]
  %v16 = vld [vmem:[%s0 + $0x10] sm:$0xff]
  %v17 = vld [vmem:[%s0 + $0x18] sm:$0xff]
  %v18 = vld [vmem:[%s0 + $0x20] sm:$0xff]
  %v19 = vld [vmem:[%s0 + $0x28] sm:$0xff]
  %v20 = vld [vmem:[%s1] sm:$0xff]
  %v21 = vld [vmem:[%s1 + $0x8] sm:$0xff]
  %v22 = vld [vmem:[%s1 + $0x10] sm:$0xff]
  %v23 = vld [vmem:[%s1 + $0x18] sm:$0xff]
  %v24 = vld [vmem:[%s2] sm:$0xff]
  %v25 = vld [vmem:[%s2 + $0x8] sm:$0xff]
  %vm26 = vcmask 392192
  %v28 = vsel %vm26, %v20, 0
  %v31 = vsel %vm26, %v21, 0
  %v34 = vsel %vm26, %v22, 0
  %v37 = vsel %vm26, %v23, 0
  %39 = vmatprep.subr.mxu0 0.0
  %40 = vmatpush1.msra.mxu0 %v14
  %41 = vmatprep.subr.mxu0 0.0
  %42 = vmatpush1.msra.mxu0 %v15
  %43 = vmatprep.subr.mxu0 0.0
  %44 = vmatpush1.msra.mxu0 %v16
  %45 = vmatprep.subr.mxu0 0.0
  %46 = vmatpush1.msra.mxu0 %v17
  %47 = vmatprep.subr.mxu0 0.0
  %48 = vmatpush1.msra.mxu0 %v18
  %49 = vmatprep.subr.mxu0 0.0
  %50 = vmatpush1.msra.mxu0 %v19
  %51 = vmatprep.subr.mxu0 0.0
  %52 = vmatpush1.msra.mxu0 0.0
  %53 = vmatprep.subr.mxu0 0.0
  %54 = vmatpush1.msra.mxu0 0.0
  %55 = vmatprep.subr.mxu0 0.0
  %56 = vmatpush1.msra.mxu0 0.0
  %57 = vmatprep.subr.mxu0 0.0
  %58 = vmatpush1.msra.mxu0 0.0
  %59 = vmatprep.subr.mxu0 0.0
  %60 = vmatpush1.msra.mxu0 0.0
  %61 = vmatprep.subr.mxu0 0.0
  %62 = vmatpush1.msra.mxu0 0.0
  %63 = vmatprep.subr.mxu0 0.0
  %64 = vmatpush1.msra.mxu0 0.0
  %65 = vmatprep.subr.mxu0 0.0
  %66 = vmatpush1.msra.mxu0 0.0
  %67 = vmatprep.subr.mxu0 0.0
  %68 = vmatpush1.msra.mxu0 0.0
  %69 = vmatprep.subr.mxu0 0.0
  %70 = vmatpush1.msra.mxu0 0.0
  %71 = vmatprep.subr.mxu0 0.0
  %72 = vmatpush1.msra.mxu0 0.0
  %73 = vmatprep.subr.mxu0 0.0
  %74 = vmatpush1.msra.mxu0 0.0
  %75 = vmatprep.subr.mxu0 0.0
  %76 = vmatpush1.msra.mxu0 0.0
  %77 = vmatprep.subr.mxu0 0.0
  %78 = vmatpush1.msra.mxu0 0.0
  %79 = vmatprep.subr.mxu0 0.0
  %80 = vmatpush1.msra.mxu0 0.0
  %81 = vmatprep.subr.mxu0 0.0
  %82 = vmatpush1.msra.mxu0 0.0
  %83 = vmatprep.subr.mxu0 0.0
  %84 = vmatpush1.msra.mxu0 0.0
  %85 = vmatprep.subr.mxu0 0.0
  %86 = vmatpush1.msra.mxu0 0.0
  %87 = vmatprep.subr.mxu0 0.0
  %88 = vmatpush1.msra.mxu0 0.0
  %89 = vmatprep.subr.mxu0 0.0
  %90 = vmatpush1.msra.mxu0 0.0
  %91 = vmatprep.subr.mxu0 0.0
  %92 = vmatpush1.msra.mxu0 0.0
  %93 = vmatprep.subr.mxu0 0.0
  %94 = vmatpush1.msra.mxu0 0.0
  %95 = vmatprep.subr.mxu0 0.0
  %96 = vmatpush1.msra.mxu0 0.0
  %97 = vmatprep.subr.mxu0 0.0
  %98 = vmatpush1.msra.mxu0 0.0
  %99 = vmatprep.subr.mxu0 0.0
  %100 = vmatpush1.msra.mxu0 0.0
  %101 = vmatprep.subr.mxu0 0.0
  %102 = vmatpush1.msra.mxu0 0.0
  %103 = vmatprep.mubr.f32.mxu0 0.0
  %104 = vmatmul.mubr.f32.gmra.mrb[0].mxu0 %v28
  %v105 = vpop.f32.mrb[0].mxu0
  %v106 = vadd.f32 0.0, %v105
  %v107 = vpop.f32.mrb[0].mxu0
  %108 = vmatprep.mubr.f32.mxu0 0.0
  %109 = vmatmul.mubr.f32.gmra.mrb[0].mxu0 %v31
  %v110 = vpop.f32.mrb[0].mxu0
  %v111 = vadd.f32 0.0, %v110
  %v112 = vpop.f32.mrb[0].mxu0
  %113 = vmatprep.mubr.f32.mxu0 0.0
  %114 = vmatmul.mubr.f32.gmra.mrb[0].mxu0 %v34
  %v115 = vpop.f32.mrb[0].mxu0
  %v116 = vadd.f32 0.0, %v115
  %v117 = vpop.f32.mrb[0].mxu0
  %118 = vmatprep.mubr.f32.mxu0 0.0
  %119 = vmatmul.mubr.f32.gmra.mrb[0].mxu0 %v37
  %v120 = vpop.f32.mrb[0].mxu0
  %v121 = vadd.f32 0.0, %v120
  %v122 = vpop.f32.mrb[0].mxu0
  %123 = vdwg.mxu0
  %vm124 = vcmp.gt.f32.partialorder %v106, 0.0
  %vm125 = vcmp.gt.f32.partialorder %v111, 0.0
  %vm126 = vcmp.gt.f32.partialorder %v116, 0.0
  %vm127 = vcmp.gt.f32.partialorder %v121, 0.0
  %v128 = vmul.f32 %v106, 0.01
  %v129 = vmul.f32 %v111, 0.01
  %v130 = vmul.f32 %v116, 0.01
  %v131 = vmul.f32 %v121, 0.01
  %v132 = vsel %vm124, %v106, %v128
  %v133 = vsel %vm125, %v111, %v129
  %v134 = vsel %vm126, %v116, %v130
  %v135 = vsel %vm127, %v121, %v131
  %140 = vrot.lane.b32.xlu0 %v132, 127
  %v141 = vpop.permute.xlu0 %140
  %142 = vrot.lane.b32.xlu0 %v133, 127
  %v143 = vpop.permute.xlu0 %142
  %144 = vrot.lane.b32.xlu0 %v134, 127
  %v145 = vpop.permute.xlu0 %144
  %146 = vrot.lane.b32.xlu0 %v135, 127
  %v147 = vpop.permute.xlu0 %146
  %152 = vrot.lane.b32.xlu0 %v132, 126
  %v153 = vpop.permute.xlu0 %152
  %154 = vrot.lane.b32.xlu0 %v133, 126
  %v155 = vpop.permute.xlu0 %154
  %156 = vrot.lane.b32.xlu0 %v134, 126
  %v157 = vpop.permute.xlu0 %156
  %158 = vrot.lane.b32.xlu0 %v135, 126
  %v159 = vpop.permute.xlu0 %158
  %vm164 = vcmask 785408
  %v166 = vsel %vm164, %v24, 0
  %v169 = vsel %vm164, %v25, 0
  %171 = vmatprep.subr.mxu0 0.0
  %172 = vmatpush1.msra.mxu0 %v132
  %173 = vmatprep.subr.mxu0 0.0
  %174 = vmatpush1.msra.mxu0 %v133
  %175 = vmatprep.subr.mxu0 0.0
  %176 = vmatpush1.msra.mxu0 %v134
  %177 = vmatprep.subr.mxu0 0.0
  %178 = vmatpush1.msra.mxu0 %v135
  %179 = vmatprep.subr.mxu0 0.0
  %180 = vmatpush1.msra.mxu0 %v141
  %181 = vmatprep.subr.mxu0 0.0
  %182 = vmatpush1.msra.mxu0 %v143
  %183 = vmatprep.subr.mxu0 0.0
  %184 = vmatpush1.msra.mxu0 %v145
  %185 = vmatprep.subr.mxu0 0.0
  %186 = vmatpush1.msra.mxu0 %v147
  %187 = vmatprep.subr.mxu0 0.0
  %188 = vmatpush1.msra.mxu0 %v153
  %189 = vmatprep.subr.mxu0 0.0
  %190 = vmatpush1.msra.mxu0 %v155
  %191 = vmatprep.subr.mxu0 0.0
  %192 = vmatpush1.msra.mxu0 %v157
  %193 = vmatprep.subr.mxu0 0.0
  %194 = vmatpush1.msra.mxu0 %v159
  %195 = vmatprep.subr.mxu0 0.0
  %196 = vmatpush1.msra.mxu0 0.0
  %197 = vmatprep.subr.mxu0 0.0
  %198 = vmatpush1.msra.mxu0 0.0
  %199 = vmatprep.subr.mxu0 0.0
  %200 = vmatpush1.msra.mxu0 0.0
  %201 = vmatprep.subr.mxu0 0.0
  %202 = vmatpush1.msra.mxu0 0.0
  %203 = vmatprep.subr.mxu0 0.0
  %204 = vmatpush1.msra.mxu0 0.0
  %205 = vmatprep.subr.mxu0 0.0
  %206 = vmatpush1.msra.mxu0 0.0
  %207 = vmatprep.subr.mxu0 0.0
  %208 = vmatpush1.msra.mxu0 0.0
  %209 = vmatprep.subr.mxu0 0.0
  %210 = vmatpush1.msra.mxu0 0.0
  %211 = vmatprep.subr.mxu0 0.0
  %212 = vmatpush1.msra.mxu0 0.0
  %213 = vmatprep.subr.mxu0 0.0
  %214 = vmatpush1.msra.mxu0 0.0
  %215 = vmatprep.subr.mxu0 0.0
  %216 = vmatpush1.msra.mxu0 0.0
  %217 = vmatprep.subr.mxu0 0.0
  %218 = vmatpush1.msra.mxu0 0.0
  %219 = vmatprep.subr.mxu0 0.0
  %220 = vmatpush1.msra.mxu0 0.0
  %221 = vmatprep.subr.mxu0 0.0
  %222 = vmatpush1.msra.mxu0 0.0
  %223 = vmatprep.subr.mxu0 0.0
  %224 = vmatpush1.msra.mxu0 0.0
  %225 = vmatprep.subr.mxu0 0.0
  %226 = vmatpush1.msra.mxu0 0.0
  %227 = vmatprep.subr.mxu0 0.0
  %228 = vmatpush1.msra.mxu0 0.0
  %229 = vmatprep.subr.mxu0 0.0
  %230 = vmatpush1.msra.mxu0 0.0
  %231 = vmatprep.subr.mxu0 0.0
  %232 = vmatpush1.msra.mxu0 0.0
  %233 = vmatprep.subr.mxu0 0.0
  %234 = vmatpush1.msra.mxu0 0.0
  %235 = vmatprep.mubr.f32.mxu0 0.0
  %236 = vmatmul.mubr.f32.gmra.mrb[0].mxu0 %v166
  %v237 = vpop.f32.mrb[0].mxu0
  %v238 = vadd.f32 0.0, %v237
  %v239 = vpop.f32.mrb[0].mxu0
  %240 = vmatprep.mubr.f32.mxu0 0.0
  %241 = vmatmul.mubr.f32.gmra.mrb[0].mxu0 %v169
  %v242 = vpop.f32.mrb[0].mxu0
  %v243 = vadd.f32 0.0, %v242
  %v244 = vpop.f32.mrb[0].mxu0
  %245 = vdwg.mxu0
  %v246 = vtanh.pop %v238
  %v247 = vtanh.pop %v243
  %v248 = vmul.f32 %v246, 1.442695
  %v249 = vpow.pop %v248
  %251 = vrot.lane.b32.xlu0 %v249, 2
  %v252 = vpop.permute.xlu0 %251
  %v254 = vmul.f32 %v15, %v252
  %v255 = vmul.f32 %v247, 1.442695
  %v256 = vpow.pop %v255
  %258 = vrot.lane.b32.xlu0 %v256, 2
  %v259 = vpop.permute.xlu0 %258
  %v261 = vmul.f32 %v14, %v259
  %263 = vset.pattern.permute.xlu0 2
  %264 = vperm.xlu0 %263, %v261
  %v265 = vpop.permute.xlu0 %264
  %268 = vset.pattern.permute.xlu0 2
  %269 = vperm.xlu0 %268, %v254
  %v270 = vpop.permute.xlu0 %269
  %272 = vset.pattern.permute.xlu0 9
  %273 = vperm.xlu0 %272, %v261
  %v274 = vpop.permute.xlu0 %273
  %276 = vset.pattern.permute.xlu0 9
  %277 = vperm.xlu0 %276, %v254
  %v278 = vpop.permute.xlu0 %277
  %vm280 = vcmask 15360
  %v281 = vsel %vm280, %v265, %v261
  %v282 = vsel %vm280, %v270, %v254
  %vm283 = vcmask 80896
  %v284 = vsel %vm283, %v281, %v274
  %v285 = vsel %vm283, %v282, %v278
  %288 = vrot.lane.b32.xlu0 %v284, 127
  %v289 = vpop.permute.xlu0 %288
  %290 = vrot.lane.b32.xlu0 %v285, 127
  %v291 = vpop.permute.xlu0 %290
  %294 = vrot.lane.b32.xlu0 %v284, 126
  %v295 = vpop.permute.xlu0 %294
  %296 = vrot.lane.b32.xlu0 %v285, 126
  %v297 = vpop.permute.xlu0 %296
  %s300 = scalar_lea.vmem %s1, 32
  %v301 = vld [vmem:[%s300] sm:$0xff]
  %v302 = vld [vmem:[%s300 + $0x8] sm:$0xff]
  %v303 = vld [vmem:[%s300 + $0x10] sm:$0xff]
  %v304 = vld [vmem:[%s300 + $0x18] sm:$0xff]
  %s305 = scalar_lea.vmem %s2, 16
  %v306 = vld [vmem:[%s305] sm:$0xff]
  %v307 = vld [vmem:[%s305 + $0x8] sm:$0xff]
  %v309 = vsel %vm26, %v301, 0
  %v312 = vsel %vm26, %v302, 0
  %v315 = vsel %vm26, %v303, 0
  %v318 = vsel %vm26, %v304, 0
  %320 = vmatprep.subr.mxu0 0.0
  %321 = vmatpush1.msra.mxu0 %v284
  %322 = vmatprep.subr.mxu0 0.0
  %323 = vmatpush1.msra.mxu0 %v285
  %324 = vmatprep.subr.mxu0 0.0
  %325 = vmatpush1.msra.mxu0 %v289
  %326 = vmatprep.subr.mxu0 0.0
  %327 = vmatpush1.msra.mxu0 %v291
  %328 = vmatprep.subr.mxu0 0.0
  %329 = vmatpush1.msra.mxu0 %v295
  %330 = vmatprep.subr.mxu0 0.0
  %331 = vmatpush1.msra.mxu0 %v297
  %332 = vmatprep.subr.mxu0 0.0
  %333 = vmatpush1.msra.mxu0 0.0
  %334 = vmatprep.subr.mxu0 0.0
  %335 = vmatpush1.msra.mxu0 0.0
  %336 = vmatprep.subr.mxu0 0.0
  %337 = vmatpush1.msra.mxu0 0.0
  %338 = vmatprep.subr.mxu0 0.0
  %339 = vmatpush1.msra.mxu0 0.0
  %340 = vmatprep.subr.mxu0 0.0
  %341 = vmatpush1.msra.mxu0 0.0
  %342 = vmatprep.subr.mxu0 0.0
  %343 = vmatpush1.msra.mxu0 0.0
  %344 = vmatprep.subr.mxu0 0.0
  %345 = vmatpush1.msra.mxu0 0.0
  %346 = vmatprep.subr.mxu0 0.0
  %347 = vmatpush1.msra.mxu0 0.0
  %348 = vmatprep.subr.mxu0 0.0
  %349 = vmatpush1.msra.mxu0 0.0
  %350 = vmatprep.subr.mxu0 0.0
  %351 = vmatpush1.msra.mxu0 0.0
  %352 = vmatprep.subr.mxu0 0.0
  %353 = vmatpush1.msra.mxu0 0.0
  %354 = vmatprep.subr.mxu0 0.0
  %355 = vmatpush1.msra.mxu0 0.0
  %356 = vmatprep.subr.mxu0 0.0
  %357 = vmatpush1.msra.mxu0 0.0
  %358 = vmatprep.subr.mxu0 0.0
  %359 = vmatpush1.msra.mxu0 0.0
  %360 = vmatprep.subr.mxu0 0.0
  %361 = vmatpush1.msra.mxu0 0.0
  %362 = vmatprep.subr.mxu0 0.0
  %363 = vmatpush1.msra.mxu0 0.0
  %364 = vmatprep.subr.mxu0 0.0
  %365 = vmatpush1.msra.mxu0 0.0
  %366 = vmatprep.subr.mxu0 0.0
  %367 = vmatpush1.msra.mxu0 0.0
  %368 = vmatprep.subr.mxu0 0.0
  %369 = vmatpush1.msra.mxu0 0.0
  %370 = vmatprep.subr.mxu0 0.0
  %371 = vmatpush1.msra.mxu0 0.0
  %372 = vmatprep.subr.mxu0 0.0
  %373 = vmatpush1.msra.mxu0 0.0
  %374 = vmatprep.subr.mxu0 0.0
  %375 = vmatpush1.msra.mxu0 0.0
  %376 = vmatprep.subr.mxu0 0.0
  %377 = vmatpush1.msra.mxu0 0.0
  %378 = vmatprep.subr.mxu0 0.0
  %379 = vmatpush1.msra.mxu0 0.0
  %380 = vmatprep.subr.mxu0 0.0
  %381 = vmatpush1.msra.mxu0 0.0
  %382 = vmatprep.subr.mxu0 0.0
  %383 = vmatpush1.msra.mxu0 0.0
  %384 = vmatprep.mubr.f32.mxu0 0.0
  %385 = vmatmul.mubr.f32.gmra.mrb[0].mxu0 %v309
  %v386 = vpop.f32.mrb[0].mxu0
  %v387 = vadd.f32 0.0, %v386
  %v388 = vpop.f32.mrb[0].mxu0
  %389 = vmatprep.mubr.f32.mxu0 0.0
  %390 = vmatmul.mubr.f32.gmra.mrb[0].mxu0 %v312
  %v391 = vpop.f32.mrb[0].mxu0
  %v392 = vadd.f32 0.0, %v391
  %v393 = vpop.f32.mrb[0].mxu0
  %394 = vmatprep.mubr.f32.mxu0 0.0
  %395 = vmatmul.mubr.f32.gmra.mrb[0].mxu0 %v315
  %v396 = vpop.f32.mrb[0].mxu0
  %v397 = vadd.f32 0.0, %v396
  %v398 = vpop.f32.mrb[0].mxu0
  %399 = vmatprep.mubr.f32.mxu0 0.0
  %400 = vmatmul.mubr.f32.gmra.mrb[0].mxu0 %v318
  %v401 = vpop.f32.mrb[0].mxu0
  %v402 = vadd.f32 0.0, %v401
  %v403 = vpop.f32.mrb[0].mxu0
  %404 = vdwg.mxu0
  %vm405 = vcmp.gt.f32.partialorder %v387, 0.0
  %vm406 = vcmp.gt.f32.partialorder %v392, 0.0
  %vm407 = vcmp.gt.f32.partialorder %v397, 0.0
  %vm408 = vcmp.gt.f32.partialorder %v402, 0.0
  %v409 = vmul.f32 %v387, 0.01
  %v410 = vmul.f32 %v392, 0.01
  %v411 = vmul.f32 %v397, 0.01
  %v412 = vmul.f32 %v402, 0.01
  %v413 = vsel %vm405, %v387, %v409
  %v414 = vsel %vm406, %v392, %v410
  %v415 = vsel %vm407, %v397, %v411
  %v416 = vsel %vm408, %v402, %v412
  %421 = vrot.lane.b32.xlu0 %v413, 127
  %v422 = vpop.permute.xlu0 %421
  %423 = vrot.lane.b32.xlu0 %v414, 127
  %v424 = vpop.permute.xlu0 %423
  %425 = vrot.lane.b32.xlu0 %v415, 127
  %v426 = vpop.permute.xlu0 %425
  %427 = vrot.lane.b32.xlu0 %v416, 127
  %v428 = vpop.permute.xlu0 %427
  %433 = vrot.lane.b32.xlu0 %v413, 126
  %v434 = vpop.permute.xlu0 %433
  %435 = vrot.lane.b32.xlu0 %v414, 126
  %v436 = vpop.permute.xlu0 %435
  %437 = vrot.lane.b32.xlu0 %v415, 126
  %v438 = vpop.permute.xlu0 %437
  %439 = vrot.lane.b32.xlu0 %v416, 126
  %v440 = vpop.permute.xlu0 %439
  %v446 = vsel %vm164, %v306, 0
  %v449 = vsel %vm164, %v307, 0
  %451 = vmatprep.subr.mxu0 0.0
  %452 = vmatpush1.msra.mxu0 %v413
  %453 = vmatprep.subr.mxu0 0.0
  %454 = vmatpush1.msra.mxu0 %v414
  %455 = vmatprep.subr.mxu0 0.0
  %456 = vmatpush1.msra.mxu0 %v415
  %457 = vmatprep.subr.mxu0 0.0
  %458 = vmatpush1.msra.mxu0 %v416
  %459 = vmatprep.subr.mxu0 0.0
  %460 = vmatpush1.msra.mxu0 %v422
  %461 = vmatprep.subr.mxu0 0.0
  %462 = vmatpush1.msra.mxu0 %v424
  %463 = vmatprep.subr.mxu0 0.0
  %464 = vmatpush1.msra.mxu0 %v426
  %465 = vmatprep.subr.mxu0 0.0
  %466 = vmatpush1.msra.mxu0 %v428
  %467 = vmatprep.subr.mxu0 0.0
  %468 = vmatpush1.msra.mxu0 %v434
  %469 = vmatprep.subr.mxu0 0.0
  %470 = vmatpush1.msra.mxu0 %v436
  %471 = vmatprep.subr.mxu0 0.0
  %472 = vmatpush1.msra.mxu0 %v438
  %473 = vmatprep.subr.mxu0 0.0
  %474 = vmatpush1.msra.mxu0 %v440
  %475 = vmatprep.subr.mxu0 0.0
  %476 = vmatpush1.msra.mxu0 0.0
  %477 = vmatprep.subr.mxu0 0.0
  %478 = vmatpush1.msra.mxu0 0.0
  %479 = vmatprep.subr.mxu0 0.0
  %480 = vmatpush1.msra.mxu0 0.0
  %481 = vmatprep.subr.mxu0 0.0
  %482 = vmatpush1.msra.mxu0 0.0
  %483 = vmatprep.subr.mxu0 0.0
  %484 = vmatpush1.msra.mxu0 0.0
  %485 = vmatprep.subr.mxu0 0.0
  %486 = vmatpush1.msra.mxu0 0.0
  %487 = vmatprep.subr.mxu0 0.0
  %488 = vmatpush1.msra.mxu0 0.0
  %489 = vmatprep.subr.mxu0 0.0
  %490 = vmatpush1.msra.mxu0 0.0
  %491 = vmatprep.subr.mxu0 0.0
  %492 = vmatpush1.msra.mxu0 0.0
  %493 = vmatprep.subr.mxu0 0.0
  %494 = vmatpush1.msra.mxu0 0.0
  %495 = vmatprep.subr.mxu0 0.0
  %496 = vmatpush1.msra.mxu0 0.0
  %497 = vmatprep.subr.mxu0 0.0
  %498 = vmatpush1.msra.mxu0 0.0
  %499 = vmatprep.subr.mxu0 0.0
  %500 = vmatpush1.msra.mxu0 0.0
  %501 = vmatprep.subr.mxu0 0.0
  %502 = vmatpush1.msra.mxu0 0.0
  %503 = vmatprep.subr.mxu0 0.0
  %504 = vmatpush1.msra.mxu0 0.0
  %505 = vmatprep.subr.mxu0 0.0
  %506 = vmatpush1.msra.mxu0 0.0
  %507 = vmatprep.subr.mxu0 0.0
  %508 = vmatpush1.msra.mxu0 0.0
  %509 = vmatprep.subr.mxu0 0.0
  %510 = vmatpush1.msra.mxu0 0.0
  %511 = vmatprep.subr.mxu0 0.0
  %512 = vmatpush1.msra.mxu0 0.0
  %513 = vmatprep.subr.mxu0 0.0
  %514 = vmatpush1.msra.mxu0 0.0
  %515 = vmatprep.mubr.f32.mxu0 0.0
  %516 = vmatmul.mubr.f32.gmra.mrb[0].mxu0 %v446
  %v517 = vpop.f32.mrb[0].mxu0
  %v518 = vadd.f32 0.0, %v517
  %v519 = vpop.f32.mrb[0].mxu0
  %520 = vmatprep.mubr.f32.mxu0 0.0
  %521 = vmatmul.mubr.f32.gmra.mrb[0].mxu0 %v449
  %v522 = vpop.f32.mrb[0].mxu0
  %v523 = vadd.f32 0.0, %v522
  %v524 = vpop.f32.mrb[0].mxu0
  %525 = vdwg.mxu0
  %v526 = vtanh.pop %v518
  %v527 = vtanh.pop %v523
  %529 = vrot.lane.b32.xlu0 %v526, 2
  %v530 = vpop.permute.xlu0 %529
  %v532 = vsub.f32 %v261, %v530
  %534 = vrot.lane.b32.xlu0 %v527, 2
  %v535 = vpop.permute.xlu0 %534
  %v537 = vadd.f32 %v254, %v535
  %539 = vrot.lane.b32.xlu0 %v532, 126
  %v540 = vpop.permute.xlu0 %539
  %543 = vrot.lane.b32.xlu0 %v537, 6
  %v544 = vpop.permute.xlu0 %543
  %vm546 = vcmask 64512
  %v547 = vsel %vm546, %v540, %v544
  %vm548 = vcmask 130048
  %549 = vst.msk [vmem:[%s3] sm:$0xff] %vm548, %v547
  // Predicated region
  $region14: #{sci_block.1} parent=0 // pred_check
    _
  $region15: #{sci_block.1} parent=0 // pred_check_branch
    %551 = sbr.rel (0) target = $region17
  $region16: #{sci_block.1} parent=0 // pred_region
    _
  $region17: #{sci_block.1} parent=0 // pred_fallthru
    _
  // Predicated region
  $region18: #{sci_block.1} parent=0 // pred_check
    _
  $region19: #{sci_block.1} parent=0 // pred_check_branch
    %553 = sbr.rel (0) target = $region21
  $region20: #{sci_block.1} parent=0 // pred_region
    _
  $region21: #{sci_block.1} parent=0 // pred_fallthru
    _

</llo_original>
